<compile_context>
chip_gen: v7x
topology: tpu7x:2x2x1
jax: 0.10.0
libtpu: 0.0.40
codegen_flags: <defaults>
</compile_context>

<pallas_src>
import jax
import jax.numpy as jnp
from jax.experimental import pallas as pl
from jax.experimental.pallas import tpu as pltpu


def _softmax_stats(a):
    """Return (p, log_p) along the last axis with a single exp pass."""
    m = jnp.max(a, axis=-1, keepdims=True)
    s = a - m
    e = jnp.exp(s)                                # one exp per element
    z = jnp.sum(e, axis=-1, keepdims=True)        # (rows, 1)
    lp = s - jnp.log(z)
    p = e * pl.reciprocal(z, approx=True)         # EUP vrcp on a (rows,1) column
    return p, lp


def _symkl_partial_kernel(x_ref, y_ref, o_ref):
    x = x_ref[...].astype(jnp.float32)
    y = y_ref[...].astype(jnp.float32)

    p_x, lp_x = _softmax_stats(x)
    p_y, lp_y = _softmax_stats(y)

    # Fused symmetric-KL integrand for this block.
    term = (p_x - p_y) * (lp_x - lp_y)            # (block_rows, C)

    rows, c = term.shape
    # Fold the sublane axis in groups of 8: elementwise adds only, no
    # cross-lane XLU reduction inside the kernel. Final reduction is deferred
    # to the wrapper (runs once, not once per grid step).
    partial = jnp.sum(term.reshape(rows // 8, 8, c), axis=0)   # (8, C) f32
    o_ref[0] = partial


def symmetric_kl(x, y, *, max_tile_bytes=2 * 1024 * 1024):
    """x, y: (N, C) logits (any float dtype). Returns scalar float32 loss."""
    assert x.shape == y.shape and x.ndim == 2
    n, c = x.shape

    itemsize = jnp.dtype(x.dtype).itemsize
    # Largest multiple-of-8 row count whose per-input tile fits the budget
    # (keeps 2 inputs x 2 pipeline buffers well inside scoped VMEM on
    # v5e/v6e/v7x), clamped to the (rounded-up) batch size.
    rows_budget = max(8, (max_tile_bytes // (c * itemsize)) // 8 * 8)
    n_up8 = ((n + 7) // 8) * 8
    block_rows = min(rows_budget, n_up8)

    num_blocks = pl.cdiv(n, block_rows)
    n_pad = num_blocks * block_rows
    if n_pad != n:
        # Zero-padded rows: softmax of a zero row is identical for x and y,
        # so (p_x - p_y) * (lp_x - lp_y) is exactly 0 there -> no contribution.
        pad = ((0, n_pad - n), (0, 0))
        x = jnp.pad(x, pad)
        y = jnp.pad(y, pad)

    tile_bytes = block_rows * c * itemsize
    vmem_limit = int(min(64 * 2**20, max(32 * 2**20, 6 * tile_bytes)))

    partials = pl.pallas_call(
        _symkl_partial_kernel,
        out_shape=jax.ShapeDtypeStruct((num_blocks, 8, c), jnp.float32),
        grid_spec=pltpu.PrefetchScalarGridSpec(
            num_scalar_prefetch=0,
            grid=(num_blocks,),
            in_specs=[
                pl.BlockSpec((block_rows, c), lambda i: (i, 0)),
                pl.BlockSpec((block_rows, c), lambda i: (i, 0)),
            ],
            out_specs=pl.BlockSpec((1, 8, c), lambda i: (i, 0, 0)),
        ),
        compiler_params=pltpu.CompilerParams(
            dimension_semantics=("parallel",),   # no carried state -> megacore-safe
            vmem_limit_bytes=vmem_limit,
        ),
    )(x, y)

    # Final cross-block / cross-lane reduction and normalization (matches
    # KLDivLoss summed over all elements, divided by batch size N, times 0.5).
    return 0.5 * jnp.sum(partials) / jnp.float32(n)


def _reference_symmetric_kl(x, y):
    x = x.astype(jnp.float32)
    y = y.astype(jnp.float32)
    lp_x = jax.nn.log_softmax(x, axis=1)
    lp_y = jax.nn.log_softmax(y, axis=1)
    p_x = jnp.exp(lp_x)
    p_y = jnp.exp(lp_y)
    n = x.shape[0]
    kl_xy = jnp.sum(p_y * (lp_y - lp_x)) / n
    kl_yx = jnp.sum(p_x * (lp_x - lp_y)) / n
    return 0.5 * (kl_xy + kl_yx)


if __name__ == "__main__":
    key = jax.random.PRNGKey(0)
    kx, ky, ka, kb = jax.random.split(key, 4)

    # Case 1: lane-aligned class dim, batch a multiple of 8.
    N, C = 16, 128
    x = jax.random.normal(kx, (N, C), dtype=jnp.float32)
    y = jax.random.normal(ky, (N, C), dtype=jnp.float32)
    out = jax.block_until_ready(symmetric_kl(x, y))
    ref = _reference_symmetric_kl(x, y)
    # Tolerance relaxed slightly because p uses pl.reciprocal(approx=True).
    assert jnp.allclose(out, ref, rtol=5e-3, atol=5e-3), (out, ref)

    # Case 2: ragged batch + non-128 class count (exercises padding path).
    N2, C2 = 13, 40
    a = jax.random.normal(ka, (N2, C2), dtype=jnp.float32)
    b = jax.random.normal(kb, (N2, C2), dtype=jnp.float32)
    out2 = jax.block_until_ready(symmetric_kl(a, b))
    ref2 = _reference_symmetric_kl(a, b)
    assert jnp.allclose(out2, ref2, rtol=5e-3, atol=5e-3), (out2, ref2)

    print("KERNEL_OK")
</pallas_src>

<mosaic_0001>
module attributes {stable_mosaic.version = 11 : i64} {
  func.func @_symkl_partial_kernel(%arg0: i32, %arg1: memref<16x128xf32, #tpu.memory_space<vmem>>, %arg2: memref<16x128xf32, #tpu.memory_space<vmem>>, %arg3: memref<1x8x128xf32, #tpu.memory_space<vmem>>) attributes {dimension_semantics = [#tpu.dimension_semantics<parallel>], iteration_bounds = array<i64: 1>, scalar_prefetch = 0 : i64, scratch_operands = 0 : i64, tpu.core_type = #tpu.core_type<tc>, window_params = [{transform_indices = @transform_0, window_bounds = array<i64: 16, 128>}, {transform_indices = @transform_1, window_bounds = array<i64: 16, 128>}, {transform_indices = @transform_2, window_bounds = array<i64: 1, 8, 128>}]} {
    %c0 = arith.constant 0 : index
    %c0_0 = arith.constant 0 : index
    %0 = vector.load %arg1[%c0, %c0_0] : memref<16x128xf32, #tpu.memory_space<vmem>>, vector<16x128xf32>
    %c0_1 = arith.constant 0 : index
    %c0_2 = arith.constant 0 : index
    %1 = vector.load %arg2[%c0_1, %c0_2] : memref<16x128xf32, #tpu.memory_space<vmem>>, vector<16x128xf32>
    %cst = arith.constant dense<0xFF800000> : vector<16xf32>
    %2 = vector.multi_reduction <maximumf>, %0, %cst [1] : vector<16x128xf32> to vector<16xf32>
    %3 = vector.shape_cast %2 : vector<16xf32> to vector<16x1xf32>
    %4 = vector.broadcast %3 : vector<16x1xf32> to vector<16x128xf32>
    %5 = arith.subf %0, %4 : vector<16x128xf32>
    %6 = math.exp %5 : vector<16x128xf32>
    %cst_3 = arith.constant dense<0.000000e+00> : vector<16xf32>
    %7 = vector.multi_reduction <add>, %6, %cst_3 [1] : vector<16x128xf32> to vector<16xf32>
    %8 = vector.shape_cast %7 : vector<16xf32> to vector<16x1xf32>
    %9 = math.log %8 : vector<16x1xf32>
    %10 = vector.broadcast %9 : vector<16x1xf32> to vector<16x128xf32>
    %11 = arith.subf %5, %10 : vector<16x128xf32>
    %12 = tpu.reciprocal %8 {approx = true} : vector<16x1xf32> -> vector<16x1xf32>
    %13 = vector.broadcast %12 : vector<16x1xf32> to vector<16x128xf32>
    %14 = arith.mulf %6, %13 : vector<16x128xf32>
    %cst_4 = arith.constant dense<0xFF800000> : vector<16xf32>
    %15 = vector.multi_reduction <maximumf>, %1, %cst_4 [1] : vector<16x128xf32> to vector<16xf32>
    %16 = vector.shape_cast %15 : vector<16xf32> to vector<16x1xf32>
    %17 = vector.broadcast %16 : vector<16x1xf32> to vector<16x128xf32>
    %18 = arith.subf %1, %17 : vector<16x128xf32>
    %19 = math.exp %18 : vector<16x128xf32>
    %cst_5 = arith.constant dense<0.000000e+00> : vector<16xf32>
    %20 = vector.multi_reduction <add>, %19, %cst_5 [1] : vector<16x128xf32> to vector<16xf32>
    %21 = vector.shape_cast %20 : vector<16xf32> to vector<16x1xf32>
    %22 = math.log %21 : vector<16x1xf32>
    %23 = vector.broadcast %22 : vector<16x1xf32> to vector<16x128xf32>
    %24 = arith.subf %18, %23 : vector<16x128xf32>
    %25 = tpu.reciprocal %21 {approx = true} : vector<16x1xf32> -> vector<16x1xf32>
    %26 = vector.broadcast %25 : vector<16x1xf32> to vector<16x128xf32>
    %27 = arith.mulf %19, %26 : vector<16x128xf32>
    %28 = arith.subf %14, %27 : vector<16x128xf32>
    %29 = arith.subf %11, %24 : vector<16x128xf32>
    %30 = arith.mulf %28, %29 : vector<16x128xf32>
    %31 = vector.shape_cast %30 : vector<16x128xf32> to vector<2x8x128xf32>
    %cst_6 = arith.constant dense<0.000000e+00> : vector<8x128xf32>
    %32 = vector.multi_reduction <add>, %31, %cst_6 [0] : vector<2x8x128xf32> to vector<8x128xf32>
    %c0_7 = arith.constant 0 : index
    %c0_8 = arith.constant 0 : index
    %c0_9 = arith.constant 0 : index
    %33 = vector.load %arg3[%c0_7, %c0_8, %c0_9] : memref<1x8x128xf32, #tpu.memory_space<vmem>>, vector<1x8x128xf32>
    %34 = vector.shape_cast %33 : vector<1x8x128xf32> to vector<8x128xf32>
    %35 = vector.shape_cast %32 : vector<8x128xf32> to vector<1x8x128xf32>
    tpu.vector_store %arg3[%c0_7, %c0_8, %c0_9], %35 {strides = array<i32>} : memref<1x8x128xf32, #tpu.memory_space<vmem>>, vector<1x8x128xf32>,
    return
  }
  func.func @transform_0(%arg0: i32) -> (i32, i32) {
    %c0_i32 = arith.constant 0 : i32
    %c0_i32_0 = arith.constant 0 : i32
    return %arg0, %c0_i32 : i32, i32
  }
  func.func @transform_1(%arg0: i32) -> (i32, i32) {
    %c0_i32 = arith.constant 0 : i32
    %c0_i32_0 = arith.constant 0 : i32
    return %arg0, %c0_i32 : i32, i32
  }
  func.func @transform_2(%arg0: i32) -> (i32, i32, i32) {
    %c0_i32 = arith.constant 0 : i32
    %c0_i32_0 = arith.constant 0 : i32
    %c0_i32_1 = arith.constant 0 : i32
    return %arg0, %c0_i32, %c0_i32_0 : i32, i32, i32
  }
}

</mosaic_0001>

<llo_original>
// kernel: tpu_custom_call.1
$region0: #{tpu_custom_call.1}
  #allocation0 [shape = 'u32[]', space=smem, size = 0x4, offset = 0x4, fixed_abs, tag = 'smem constant byte address 0x4 - core index']
  #allocation1 [shape = 'u32[144,128]{1,0:T(1,128)}', space=vmem, size = 0x12000, scoped, tag = 'internal scratch']
  %s0 = inlined_call_operand.hbm [shape: f32[16,128], index: 0, kind: input, shape index: {}]
  %s1 = inlined_call_operand.hbm [shape: f32[16,128], index: 1, kind: input, shape index: {}]
  %s2 = inlined_call_operand.hbm [shape: f32[1,8,128], index: 2, kind: output, shape index: {}]
  %s3 = sld [smem:[#allocation0]]
  $region26: #{tpu_custom_call.1} parent=0
    _
  %s5 = ssub.s32 1, %s3
  %s6 = scalar_select 0, %s5, %s3
  $region1: #{tpu_custom_call.1} parent=0
    #allocation2 [shape = 'u8[8192]{0}', space=vmem, size = 0x2000, scoped, tag = 'input window, operand 0, single buffered']
    #allocation3 [shape = 's32[1]{0}', space=sflag, size = 0x4, scoped, tag = 'scoped memory for tpu_custom_call.1']
    #allocation4 [shape = 's32[1]{0}', space=sflag, size = 0x4, scoped, tag = 'scoped memory for tpu_custom_call.1']
    #allocation5 [shape = 'u8[8192]{0}', space=vmem, size = 0x2000, scoped, tag = 'input window, operand 1, single buffered']
    #allocation6 [shape = 's32[1]{0}', space=sflag, size = 0x4, scoped, tag = 'scoped memory for tpu_custom_call.1']
    #allocation7 [shape = 'u8[4096]{0}', space=vmem, size = 0x1000, scoped, tag = 'output window, operand 0, single buffered']
    %7 = vsyncpa [#allocation3], 0
    %8 = vsyncpa [#allocation6], 0
    %9 = vsyncpa [#allocation4], 0
    // Predicated region
    $region2: #{tpu_custom_call.1} parent=1 // pred_check
      _
    $region3: #{tpu_custom_call.1} parent=1 // pred_check_branch
      %11 = sbr.rel (0) target = $region5
    $region4: #{tpu_custom_call.1} parent=1 // pred_region
      %s13 = ssub.s32 256, 256
      %14 = vsyncadd [#allocation3], %s13
      %s15 = sshll.u32 [#allocation2], 4
      %s16 = int_to_ptr.vmem [resolvable:$true] %s15
      %21 = dma.hbm_to_vmem [thread:$0]  %s0, 256, %s16, [#allocation3], 128, 128, 8
    $region5: #{tpu_custom_call.1} parent=1 // pred_fallthru
      _
    // Predicated region
    $region6: #{tpu_custom_call.1} parent=1 // pred_check
      _
    $region7: #{tpu_custom_call.1} parent=1 // pred_check_branch
      %23 = sbr.rel (0) target = $region9
    $region8: #{tpu_custom_call.1} parent=1 // pred_region
      %s25 = ssub.s32 256, 256
      %26 = vsyncadd [#allocation6], %s25
      %s27 = sshll.u32 [#allocation5], 4
      %s28 = int_to_ptr.vmem [resolvable:$true] %s27
      %33 = dma.hbm_to_vmem [thread:$0]  %s1, 256, %s28, [#allocation6], 128, 128, 8
    $region9: #{tpu_custom_call.1} parent=1 // pred_fallthru
      _
    // Predicated region
    $region10: #{tpu_custom_call.1} parent=1 // pred_check
      _
    $region11: #{tpu_custom_call.1} parent=1 // pred_check_branch
      %35 = sbr.rel (0) target = $region13
    $region12: #{tpu_custom_call.1} parent=1 // pred_region
      %36 = dma.done [#allocation3], 256
    $region13: #{tpu_custom_call.1} parent=1 // pred_fallthru
      _
    // Predicated region
    $region14: #{tpu_custom_call.1} parent=1 // pred_check
      _
    $region15: #{tpu_custom_call.1} parent=1 // pred_check_branch
      %38 = sbr.rel (0) target = $region17
    $region16: #{tpu_custom_call.1} parent=1 // pred_region
      %39 = dma.done [#allocation6], 256
    $region17: #{tpu_custom_call.1} parent=1 // pred_fallthru
      _
    %v40 = vld [vmem:[#allocation2] sm:$0xff]
    %v41 = vld [vmem:[#allocation2 + $0x8] sm:$0xff]
    %v42 = vld [vmem:[#allocation5] sm:$0xff]
    %v43 = vld [vmem:[#allocation5 + $0x8] sm:$0xff]
    %44 = vmax.xlane.f32.xlu0 %v40
    %v45 = vpop.xlane.xlu0 %44
    %46 = vmax.xlane.f32.xlu0 %v41
    %v47 = vpop.xlane.xlu0 %46
    %v48 = vsub.f32 %v40, %v45
    %v49 = vsub.f32 %v41, %v47
    %v50 = vmul.f32 %v48, 1.442695
    %v51 = vpow.pop %v50
    %v52 = vmul.f32 %v49, 1.442695
    %v53 = vpow.pop %v52
    %54 = vadd.xlane.f32.xlu0 %v51
    %v55 = vpop.xlane.xlu0 %54
    %56 = vadd.xlane.f32.xlu0 %v53
    %v57 = vpop.xlane.xlu0 %56
    %v58 = vlog2.pop %v55
    %v59 = vmul.f32 %v58, 0.6931472
    %v60 = vlog2.pop %v57
    %v61 = vmul.f32 %v60, 0.6931472
    %v62 = vsub.f32 %v48, %v59
    %v63 = vsub.f32 %v49, %v61
    %v64 = vrcp.pop %v55
    %v65 = vrcp.pop %v57
    %v66 = vmul.f32 %v51, %v64
    %v67 = vmul.f32 %v53, %v65
    %68 = vmax.xlane.f32.xlu0 %v42
    %v69 = vpop.xlane.xlu0 %68
    %70 = vmax.xlane.f32.xlu0 %v43
    %v71 = vpop.xlane.xlu0 %70
    %v72 = vsub.f32 %v42, %v69
    %v73 = vsub.f32 %v43, %v71
    %v74 = vmul.f32 %v72, 1.442695
    %v75 = vpow.pop %v74
    %v76 = vmul.f32 %v73, 1.442695
    %v77 = vpow.pop %v76
    %78 = vadd.xlane.f32.xlu0 %v75
    %v79 = vpop.xlane.xlu0 %78
    %80 = vadd.xlane.f32.xlu0 %v77
    %v81 = vpop.xlane.xlu0 %80
    %v82 = vlog2.pop %v79
    %v83 = vmul.f32 %v82, 0.6931472
    %v84 = vlog2.pop %v81
    %v85 = vmul.f32 %v84, 0.6931472
    %v86 = vsub.f32 %v72, %v83
    %v87 = vsub.f32 %v73, %v85
    %v88 = vrcp.pop %v79
    %v89 = vrcp.pop %v81
    %v90 = vmul.f32 %v75, %v88
    %v91 = vmul.f32 %v77, %v89
    %v92 = vsub.f32 %v66, %v90
    %v93 = vsub.f32 %v67, %v91
    %v94 = vsub.f32 %v62, %v86
    %v95 = vsub.f32 %v63, %v87
    %v96 = vmul.f32 %v92, %v94
    %v97 = vmul.f32 %v93, %v95
    %v98 = vadd.f32 %v96, %v97
    %99 = vst [vmem:[#allocation7] sm:$0xff] %v98
    // Predicated region
    $region18: #{tpu_custom_call.1} parent=1 // pred_check
      _
    $region19: #{tpu_custom_call.1} parent=1 // pred_check_branch
      %101 = sbr.rel (0) target = $region21
    $region20: #{tpu_custom_call.1} parent=1 // pred_region
      %s103 = ssub.s32 128, 128
      %104 = vsyncadd [#allocation4], %s103
      %s106 = sshll.u32 [#allocation7], 4
      %s107 = int_to_ptr.vmem [resolvable:$true] %s106
      %109 = dma.vmem_to_hbm [thread:$0]  %s107, 128, %s2, [#allocation4]
    $region21: #{tpu_custom_call.1} parent=1 // pred_fallthru
      _
    // Predicated region
    $region22: #{tpu_custom_call.1} parent=1 // pred_check
      _
    $region23: #{tpu_custom_call.1} parent=1 // pred_check_branch
      %111 = sbr.rel (0) target = $region25
    $region24: #{tpu_custom_call.1} parent=1 // pred_region
      %112 = dma.done [#allocation4], 128
    $region25: #{tpu_custom_call.1} parent=1 // pred_fallthru
      _
    %113 = vsyncpa [#allocation3], 1
    %114 = vsyncpa [#allocation6], 1
    %115 = vsyncpa [#allocation4], 1

</llo_original>
